<compile_context>
chip_gen: v7x
topology: tpu7x:2x2x1
jax: 0.10.0
libtpu: 0.0.40
codegen_flags: <defaults>
</compile_context>

<pallas_src>
import jax
import jax.numpy as jnp
from jax.experimental import pallas as pl
from jax.experimental.pallas import tpu as pltpu


def fused_mlp_softmax_kernel(x_ref, w_ref, b_ref, o_ref):
    # Single fused matmul + bias: (TB, 8) @ (8, K) + (1, K) -> (TB, K)
    logits = jnp.dot(x_ref[...], w_ref[...],
                     preferred_element_type=jnp.float32) + b_ref[...]
    # Numerically-stable softmax over the last (K) dim.
    m = jnp.max(logits, axis=-1, keepdims=True)
    e = jnp.exp(logits - m)
    denom = jnp.sum(e, axis=-1, keepdims=True)
    # EUP approximate reciprocal + one Newton refinement (keeps the divide off
    # the VALU while matching exact-division accuracy to ~f32).
    r = pl.reciprocal(denom, approx=True)
    r = r * (2.0 - denom * r)
    o_ref[...] = (e * r).astype(o_ref.dtype)


def _round_up(n, m):
    return ((n + m - 1) // m) * m


def fuse_params(params):
    """Collapse the 3 linear layers into one affine map. Call ONCE per params."""
    w1, b1 = params["w1"], params["b1"]
    w2, b2 = params["w2"], params["b2"]
    w3, b3 = params["w3"], params["b3"]
    w_fused = (w1 @ w2) @ w3                      # (8, K)
    b_fused = ((b1 @ w2) + b2) @ w3 + b3          # (1, K)
    return w_fused, b_fused


def temp_layer_h_forward(x, w_fused, b_fused, tb=8192):
    """x: (B, 8) float32. w_fused: (8, K). b_fused: (1, K). Returns (B, K)."""
    B, F = x.shape
    K = w_fused.shape[1]

    # Batch tile: multiple of 8, no bigger than the (8-rounded) batch.
    TB = min(_round_up(tb, 8), _round_up(B, 8))
    grid = (pl.cdiv(B, TB),)   # partial last block handled by Pallas masking

    return pl.pallas_call(
        fused_mlp_softmax_kernel,
        out_shape=jax.ShapeDtypeStruct((B, K), jnp.float32),
        grid=grid,
        in_specs=[
            pl.BlockSpec((TB, F), lambda i: (i, 0)),   # x tile (pipelined)
            pl.BlockSpec((F, K), lambda i: (0, 0)),    # fused weights (resident)
            pl.BlockSpec((1, K), lambda i: (0, 0)),    # fused bias (resident)
        ],
        out_specs=pl.BlockSpec((TB, K), lambda i: (i, 0)),   # narrow K-col store
        compiler_params=pltpu.CompilerParams(
            dimension_semantics=("parallel",),
            vmem_limit_bytes=32 << 20),
    )(x, w_fused, b_fused)


def init_params(key, K=3):
    """Deterministic init mimicking nn.Linear's uniform(-1/sqrt(fan_in), ...)."""
    def linear(key, fan_in, fan_out):
        kw, kb = jax.random.split(key)
        bound = 1.0 / jnp.sqrt(fan_in)
        w = jax.random.uniform(kw, (fan_in, fan_out), jnp.float32, -bound, bound)
        b = jax.random.uniform(kb, (1, fan_out), jnp.float32, -bound, bound)
        return w, b

    k1, k2, k3 = jax.random.split(key, 3)
    w1, b1 = linear(k1, 8, 64)
    w2, b2 = linear(k2, 64, 64)
    w3, b3 = linear(k3, 64, K)
    return {"w1": w1, "b1": b1, "w2": w2, "b2": b2, "w3": w3, "b3": b3}


def reference_forward(x, p):
    h = x @ p["w1"] + p["b1"]
    h = h @ p["w2"] + p["b2"]
    logits = h @ p["w3"] + p["b3"]
    return jax.nn.softmax(logits, axis=-1)


if __name__ == "__main__":
    key = jax.random.PRNGKey(0)
    kx, kp, kx2 = jax.random.split(key, 3)

    B, K = 8, 3
    params = init_params(kp, K=K)
    w_fused, b_fused = fuse_params(params)   # hoisted out of the per-call path

    # Small shape consistent with the module (batch=8, in_features=8).
    x = jax.random.normal(kx, (B, 8), dtype=jnp.float32)
    out = jax.block_until_ready(temp_layer_h_forward(x, w_fused, b_fused))
    ref = reference_forward(x, params)
    assert out.shape == (B, K)
    assert jnp.allclose(out, ref, atol=1e-5, rtol=1e-4), "mismatch vs reference"
    assert jnp.allclose(jnp.sum(out, axis=-1), 1.0, atol=1e-5), "softmax rows != 1"

    # Exercise the multi-step pipelined grid path, including a partial
    # (masked) last block: 520 rows with a 128-row tile -> 5 grid steps.
    B2 = 520
    x2 = jax.random.normal(kx2, (B2, 8), dtype=jnp.float32)
    out2 = jax.block_until_ready(temp_layer_h_forward(x2, w_fused, b_fused, tb=128))
    ref2 = reference_forward(x2, params)
    assert out2.shape == (B2, K)
    assert jnp.allclose(out2, ref2, atol=1e-5, rtol=1e-4), "grid-path mismatch"
    assert jnp.allclose(jnp.sum(out2, axis=-1), 1.0, atol=1e-5), "softmax rows != 1"

    print("KERNEL_OK")
</pallas_src>

<mosaic_0001>
module attributes {stable_mosaic.version = 11 : i64} {
  func.func @fused_mlp_softmax_kernel(%arg0: i32, %arg1: memref<8x8xf32, #tpu.memory_space<vmem>>, %arg2: memref<8x3xf32, #tpu.memory_space<vmem>>, %arg3: memref<1x3xf32, #tpu.memory_space<vmem>>, %arg4: memref<8x3xf32, #tpu.memory_space<vmem>>) attributes {dimension_semantics = [#tpu.dimension_semantics<parallel>], iteration_bounds = array<i64: 1>, scalar_prefetch = 0 : i64, scratch_operands = 0 : i64, tpu.core_type = #tpu.core_type<tc>, window_params = [{transform_indices = @transform_0, window_bounds = array<i64: 8, 8>}, {pipeline_mode = #tpu.pipeline_mode<synchronous>, transform_indices = @transform_1, window_bounds = array<i64: 8, 3>}, {pipeline_mode = #tpu.pipeline_mode<synchronous>, transform_indices = @transform_2, window_bounds = array<i64: 1, 3>}, {transform_indices = @transform_3, window_bounds = array<i64: 8, 3>}]} {
    %c0 = arith.constant 0 : index
    %c0_0 = arith.constant 0 : index
    %0 = vector.load %arg1[%c0, %c0_0] : memref<8x8xf32, #tpu.memory_space<vmem>>, vector<8x8xf32>
    %c0_1 = arith.constant 0 : index
    %c0_2 = arith.constant 0 : index
    %1 = vector.load %arg2[%c0_1, %c0_2] : memref<8x3xf32, #tpu.memory_space<vmem>>, vector<8x3xf32>
    %cst = arith.constant dense<0.000000e+00> : vector<8x3xf32>
    %2 = tpu.matmul %0, %1, %cst {dimension_numbers = #tpu.dot_dimension_numbers<[1], [0], [0], [1], [0, 0, 1, 1], [], []>} : vector<8x8xf32>, vector<8x3xf32>, vector<8x3xf32> -> vector<8x3xf32>
    %c0_3 = arith.constant 0 : index
    %c0_4 = arith.constant 0 : index
    %3 = vector.load %arg3[%c0_3, %c0_4] : memref<1x3xf32, #tpu.memory_space<vmem>>, vector<1x3xf32>
    %4 = vector.broadcast %3 : vector<1x3xf32> to vector<8x3xf32>
    %5 = arith.addf %2, %4 : vector<8x3xf32>
    %cst_5 = arith.constant dense<0xFF800000> : vector<8xf32>
    %6 = vector.multi_reduction <maximumf>, %5, %cst_5 [1] : vector<8x3xf32> to vector<8xf32>
    %7 = vector.shape_cast %6 : vector<8xf32> to vector<8x1xf32>
    %8 = vector.broadcast %7 : vector<8x1xf32> to vector<8x3xf32>
    %9 = arith.subf %5, %8 : vector<8x3xf32>
    %10 = math.exp %9 : vector<8x3xf32>
    %cst_6 = arith.constant dense<0.000000e+00> : vector<8xf32>
    %11 = vector.multi_reduction <add>, %10, %cst_6 [1] : vector<8x3xf32> to vector<8xf32>
    %12 = vector.shape_cast %11 : vector<8xf32> to vector<8x1xf32>
    %13 = tpu.reciprocal %12 {approx = true} : vector<8x1xf32> -> vector<8x1xf32>
    %14 = arith.mulf %12, %13 : vector<8x1xf32>
    %cst_7 = arith.constant 2.000000e+00 : f32
    %15 = vector.broadcast %cst_7 : f32 to vector<8x1xf32>
    %16 = arith.subf %15, %14 : vector<8x1xf32>
    %17 = arith.mulf %13, %16 : vector<8x1xf32>
    %18 = vector.broadcast %17 : vector<8x1xf32> to vector<8x3xf32>
    %19 = arith.mulf %10, %18 : vector<8x3xf32>
    %c0_8 = arith.constant 0 : index
    %c0_9 = arith.constant 0 : index
    %20 = vector.load %arg4[%c0_8, %c0_9] : memref<8x3xf32, #tpu.memory_space<vmem>>, vector<8x3xf32>
    tpu.vector_store %arg4[%c0_8, %c0_9], %19 {strides = array<i32>} : memref<8x3xf32, #tpu.memory_space<vmem>>, vector<8x3xf32>,
    return
  }
  func.func @transform_0(%arg0: i32) -> (i32, i32) {
    %c0_i32 = arith.constant 0 : i32
    %c0_i32_0 = arith.constant 0 : i32
    return %arg0, %c0_i32 : i32, i32
  }
  func.func @transform_1(%arg0: i32) -> (i32, i32) {
    %c0_i32 = arith.constant 0 : i32
    %c0_i32_0 = arith.constant 0 : i32
    %c0_i32_1 = arith.constant 0 : i32
    return %c0_i32, %c0_i32_0 : i32, i32
  }
  func.func @transform_2(%arg0: i32) -> (i32, i32) {
    %c0_i32 = arith.constant 0 : i32
    %c0_i32_0 = arith.constant 0 : i32
    %c0_i32_1 = arith.constant 0 : i32
    return %c0_i32, %c0_i32_0 : i32, i32
  }
  func.func @transform_3(%arg0: i32) -> (i32, i32) {
    %c0_i32 = arith.constant 0 : i32
    %c0_i32_0 = arith.constant 0 : i32
    return %arg0, %c0_i32 : i32, i32
  }
}

</mosaic_0001>

<llo_original>
// kernel: tpu_custom_call.1
$region0: #{tpu_custom_call.1}
  #allocation0 [shape = 'u32[]', space=smem, size = 0x4, offset = 0x4, fixed_abs, tag = 'smem constant byte address 0x4 - core index']
  #allocation1 [shape = 'u32[144,128]{1,0:T(1,128)}', space=vmem, size = 0x12000, scoped, tag = 'internal scratch']
  %s0 = inlined_call_operand.vmem [shape: f32[8,8], index: 0, kind: input, shape index: {}]
  %s1 = inlined_call_operand.vmem [shape: f32[8,3], index: 1, kind: input, shape index: {}]
  %s2 = inlined_call_operand.vmem [shape: f32[1,3], index: 2, kind: input, shape index: {}]
  %s3 = inlined_call_operand.vmem [shape: f32[8,3], index: 3, kind: output, shape index: {}]
  %s4 = sld [smem:[#allocation0]]
  $region22: #{tpu_custom_call.1} parent=0
    _
  %s6 = ssub.s32 1, %s4
  %s7 = scalar_select 0, %s6, %s4
  // Predicated region
  $region2: #{tpu_custom_call.1} parent=0 // pred_check
    _
  $region3: #{tpu_custom_call.1} parent=0 // pred_check_branch
    %9 = sbr.rel (0) target = $region5
  $region4: #{tpu_custom_call.1} parent=0 // pred_region
    _
  $region5: #{tpu_custom_call.1} parent=0 // pred_fallthru
    _
  // Predicated region
  $region6: #{tpu_custom_call.1} parent=0 // pred_check
    _
  $region7: #{tpu_custom_call.1} parent=0 // pred_check_branch
    %11 = sbr.rel (0) target = $region9
  $region8: #{tpu_custom_call.1} parent=0 // pred_region
    _
  $region9: #{tpu_custom_call.1} parent=0 // pred_fallthru
    _
  // Predicated region
  $region10: #{tpu_custom_call.1} parent=0 // pred_check
    _
  $region11: #{tpu_custom_call.1} parent=0 // pred_check_branch
    %13 = sbr.rel (0) target = $region13
  $region12: #{tpu_custom_call.1} parent=0 // pred_region
    _
  $region13: #{tpu_custom_call.1} parent=0 // pred_fallthru
    _
  %v14 = vld [vmem:[%s0] sm:$0xff]
  %v15 = vld [vmem:[%s1] sm:$0xff]
  %v16 = vld [vmem:[%s2] sm:$0x1]
  %v18 = vlaneseq
  %v19 = vshrl.u32 %v18, 7
  %v20 = vsub.s32 0, %v19
  %v21 = vrot.slane %v16, %v20
  %vm23 = vcmask 64512
  %v25 = vsel %vm23, %v14, 0
  %27 = vmatprep.subr.mxu0 0.0
  %28 = vmatpush1.msra.mxu0 %v15
  %29 = vmatprep.subr.mxu0 0.0
  %30 = vmatpush1.msra.mxu0 0.0
  %31 = vmatprep.subr.mxu0 0.0
  %32 = vmatpush1.msra.mxu0 0.0
  %33 = vmatprep.subr.mxu0 0.0
  %34 = vmatpush1.msra.mxu0 0.0
  %35 = vmatprep.subr.mxu0 0.0
  %36 = vmatpush1.msra.mxu0 0.0
  %37 = vmatprep.subr.mxu0 0.0
  %38 = vmatpush1.msra.mxu0 0.0
  %39 = vmatprep.subr.mxu0 0.0
  %40 = vmatpush1.msra.mxu0 0.0
  %41 = vmatprep.subr.mxu0 0.0
  %42 = vmatpush1.msra.mxu0 0.0
  %43 = vmatprep.subr.mxu0 0.0
  %44 = vmatpush1.msra.mxu0 0.0
  %45 = vmatprep.subr.mxu0 0.0
  %46 = vmatpush1.msra.mxu0 0.0
  %47 = vmatprep.subr.mxu0 0.0
  %48 = vmatpush1.msra.mxu0 0.0
  %49 = vmatprep.subr.mxu0 0.0
  %50 = vmatpush1.msra.mxu0 0.0
  %51 = vmatprep.subr.mxu0 0.0
  %52 = vmatpush1.msra.mxu0 0.0
  %53 = vmatprep.subr.mxu0 0.0
  %54 = vmatpush1.msra.mxu0 0.0
  %55 = vmatprep.subr.mxu0 0.0
  %56 = vmatpush1.msra.mxu0 0.0
  %57 = vmatprep.subr.mxu0 0.0
  %58 = vmatpush1.msra.mxu0 0.0
  %59 = vmatprep.subr.mxu0 0.0
  %60 = vmatpush1.msra.mxu0 0.0
  %61 = vmatprep.subr.mxu0 0.0
  %62 = vmatpush1.msra.mxu0 0.0
  %63 = vmatprep.subr.mxu0 0.0
  %64 = vmatpush1.msra.mxu0 0.0
  %65 = vmatprep.subr.mxu0 0.0
  %66 = vmatpush1.msra.mxu0 0.0
  %67 = vmatprep.subr.mxu0 0.0
  %68 = vmatpush1.msra.mxu0 0.0
  %69 = vmatprep.subr.mxu0 0.0
  %70 = vmatpush1.msra.mxu0 0.0
  %71 = vmatprep.subr.mxu0 0.0
  %72 = vmatpush1.msra.mxu0 0.0
  %73 = vmatprep.subr.mxu0 0.0
  %74 = vmatpush1.msra.mxu0 0.0
  %75 = vmatprep.subr.mxu0 0.0
  %76 = vmatpush1.msra.mxu0 0.0
  %77 = vmatprep.subr.mxu0 0.0
  %78 = vmatpush1.msra.mxu0 0.0
  %79 = vmatprep.subr.mxu0 0.0
  %80 = vmatpush1.msra.mxu0 0.0
  %81 = vmatprep.subr.mxu0 0.0
  %82 = vmatpush1.msra.mxu0 0.0
  %83 = vmatprep.subr.mxu0 0.0
  %84 = vmatpush1.msra.mxu0 0.0
  %85 = vmatprep.subr.mxu0 0.0
  %86 = vmatpush1.msra.mxu0 0.0
  %87 = vmatprep.subr.mxu0 0.0
  %88 = vmatpush1.msra.mxu0 0.0
  %89 = vmatprep.subr.mxu0 0.0
  %90 = vmatpush1.msra.mxu0 0.0
  %91 = vmatprep.mubr.f32.mxu0 0.0
  %92 = vmatmul.mubr.f32.gmra.mrb[0].mxu0 %v25
  %v93 = vpop.f32.mrb[0].mxu0
  %v94 = vadd.f32 %v21, %v93
  %v95 = vpop.f32.mrb[0].mxu0
  %96 = vdwg.mxu0
  %vm97 = vcmask 23552
  %v98 = vsel %vm97, %v94, -inf
  %99 = vmax.xlane.f32.xlu0 %v98
  %v100 = vpop.xlane.xlu0 %99
  %v101 = vsub.f32 %v94, %v100
  %v102 = vmul.f32 %v101, 1.442695
  %v103 = vpow.pop %v102
  %v104 = vsel %vm97, %v103, 0.0
  %105 = vadd.xlane.f32.xlu0 %v104
  %v106 = vpop.xlane.xlu0 %105
  %v107 = vrcp.pop %v106
  %v108 = vmul.f32 %v106, %v107
  %v109 = vsub.f32 2.0, %v108
  %v110 = vmul.f32 %v107, %v109
  %v111 = vmul.f32 %v103, %v110
  %112 = vst.msk [vmem:[%s3] sm:$0xff] %vm97, %v111
  // Predicated region
  $region14: #{tpu_custom_call.1} parent=0 // pred_check
    _
  $region15: #{tpu_custom_call.1} parent=0 // pred_check_branch
    %114 = sbr.rel (0) target = $region17
  $region16: #{tpu_custom_call.1} parent=0 // pred_region
    _
  $region17: #{tpu_custom_call.1} parent=0 // pred_fallthru
    _
  // Predicated region
  $region18: #{tpu_custom_call.1} parent=0 // pred_check
    _
  $region19: #{tpu_custom_call.1} parent=0 // pred_check_branch
    %116 = sbr.rel (0) target = $region21
  $region20: #{tpu_custom_call.1} parent=0 // pred_region
    _
  $region21: #{tpu_custom_call.1} parent=0 // pred_fallthru
    _

</llo_original>
